<compile_context>
chip_gen: v7x
topology: tpu7x:2x2x1
jax: 0.10.0
libtpu: 0.0.40
codegen_flags: <defaults>
</compile_context>

<pallas_src>
import functools
import math

import jax
import jax.numpy as jnp
from jax.experimental import pallas as pl
from jax.experimental.pallas import tpu as pltpu


# ---------------------------------------------------------------------------
# Fused Pallas kernel: one batch instance per grid step, everything VMEM-resident
# ---------------------------------------------------------------------------

def _fused_graphcnn_kernel(x_ref, adj_ref, gp_ref, params_ref,
                           pooled_out_ref, h_out_ref, *, layout):
    """One grid step = one graph instance.

    layout: static tuple, one entry per graph-conv layer; each entry is a tuple of
            ("bn", row_off, w_rows) or ("lin", row_off, w_rows) describing where that
            MLP sub-layer's parameters live inside the packed slab.
            "bn" rows  = [W (w_rows), gamma (1), beta (1)]   (bias dropped: BN cancels it)
            "lin" rows = [W (w_rows), bias (1)]
    """
    adj = adj_ref[0]            # (N, N)
    h = x_ref[0]                # (N, D_in)
    params = params_ref[...]    # whole slab (~14 KiB), one DMA, static slices below

    for mlp_layout in layout:
        # pooled = Adj_block @ h   (MXU)
        z = jnp.dot(adj, h, preferred_element_type=jnp.float32)

        for kind, off, nw in mlp_layout:
            w = params[off:off + nw]                       # (in, H), static slice
            if kind == "bn":
                gamma = params[off + nw:off + nw + 1]      # (1, H)
                beta = params[off + nw + 1:off + nw + 2]   # (1, H)
                # Linear (bias omitted: exactly cancelled by batch-mean subtraction)
                z = jnp.dot(z, w, preferred_element_type=jnp.float32)
                # BatchNorm1d, training-mode batch stats, biased variance, eps=1e-5.
                # One-pass variance + folded affine shortens the serial chain.
                mean = jnp.mean(z, axis=0, keepdims=True)
                mean_sq = jnp.mean(z * z, axis=0, keepdims=True)
                var = mean_sq - mean * mean
                scale = gamma * jax.lax.rsqrt(var + 1e-5)
                shift = beta - mean * scale
                z = jnp.maximum(z * scale + shift, 0.0)    # ReLU
            else:  # final Linear of the MLP (no BN): bias matters
                b = params[off + nw:off + nw + 1]
                z = jnp.dot(z, w, preferred_element_type=jnp.float32) + b

        # F.leaky_relu, default negative_slope = 0.01
        h = jnp.maximum(z, 0.01 * z)

    h_out_ref[0] = h.astype(h_out_ref.dtype)
    pooled_out_ref[0] = jnp.dot(
        gp_ref[0], h, preferred_element_type=jnp.float32
    ).astype(pooled_out_ref.dtype)


def _forward_impl(x, adj, graph_pool, param_slab, *, layout, hidden_dim):
    """x: (B, N, D_in), adj: (B, N, N), graph_pool: (B, G, N), param_slab: (rows, H)."""
    batch, n_nodes, in_dim = x.shape
    n_graphs = graph_pool.shape[1]
    n_rows = param_slab.shape[0]

    # Scale guard: per-step working set (double-buffered tiles + slab) must stay well under
    # the smallest default scoped VMEM (16 MiB on v5e).  TODO(synk): K-tile adj@h via a
    # second grid axis if n_nodes ever grows past ~1-2k nodes.
    per_step_bytes = 4 * (2 * (n_nodes * in_dim + n_nodes * n_nodes + n_graphs * n_nodes
                               + n_graphs * hidden_dim + n_nodes * hidden_dim)
                          + n_rows * hidden_dim)
    assert per_step_bytes < 14 * 1024 * 1024, "working set too big; K-tile adj@h"

    kernel = functools.partial(_fused_graphcnn_kernel, layout=layout)

    pooled_h, h_nodes = pl.pallas_call(
        kernel,
        out_shape=(
            jax.ShapeDtypeStruct((batch, n_graphs, hidden_dim), jnp.float32),
            jax.ShapeDtypeStruct((batch, n_nodes, hidden_dim), jnp.float32),
        ),
        grid=(batch,),
        in_specs=[
            pl.BlockSpec((1, n_nodes, in_dim), lambda b: (b, 0, 0)),
            pl.BlockSpec((1, n_nodes, n_nodes), lambda b: (b, 0, 0)),
            pl.BlockSpec((1, n_graphs, n_nodes), lambda b: (b, 0, 0)),
            # Single packed parameter slab, same block for every grid step (fetched once).
            pl.BlockSpec((n_rows, hidden_dim), lambda b: (0, 0)),
        ],
        out_specs=(
            pl.BlockSpec((1, n_graphs, hidden_dim), lambda b: (b, 0, 0)),
            pl.BlockSpec((1, n_nodes, hidden_dim), lambda b: (b, 0, 0)),
        ),
        compiler_params=pltpu.CompilerParams(
            dimension_semantics=("parallel",),   # v7x: shard batch across both TCs
        ),
    )(x, adj, graph_pool, param_slab)
    return pooled_h, h_nodes


# ---------------------------------------------------------------------------
# Parameter construction (PyTorch defaults), slab packing, model wrapper
# ---------------------------------------------------------------------------

def _init_mlp_params(key, num_mlp_layers, in_dim, hidden_dim, out_dim):
    """Structured per-MLP-sub-layer params (W, b, and BN gamma/beta for hidden layers)."""
    if num_mlp_layers == 1:
        dims = [(in_dim, out_dim)]
    else:
        dims = ([(in_dim, hidden_dim)]
                + [(hidden_dim, hidden_dim)] * (num_mlp_layers - 2)
                + [(hidden_dim, out_dim)])
    layers = []
    for li, (di, do) in enumerate(dims):
        key, k1, k2 = jax.random.split(key, 3)
        bound = 1.0 / math.sqrt(di)                      # nn.Linear default init
        p = {
            "w": jax.random.uniform(k1, (di, do), jnp.float32, -bound, bound),
            "b": jax.random.uniform(k2, (1, do), jnp.float32, -bound, bound),
        }
        if num_mlp_layers > 1 and li < len(dims) - 1:    # BN after every hidden linear
            p["gamma"] = jnp.ones((1, do), jnp.float32)
            p["beta"] = jnp.zeros((1, do), jnp.float32)
        layers.append(p)
    return layers, key


def _build_param_slab(conv_layer_params):
    """Pack all parameters into one (total_rows, hidden_dim) slab + static layout metadata."""
    rows, layout, off = [], [], 0
    for mlp in conv_layer_params:
        mlp_layout = []
        for p in mlp:
            nw = p["w"].shape[0]
            if "gamma" in p:
                # hidden Linear + BN: drop the bias (mathematically cancelled by the
                # batch-mean subtraction in training-mode BatchNorm).
                rows.extend([p["w"], p["gamma"], p["beta"]])
                mlp_layout.append(("bn", off, nw))
                off += nw + 2
            else:
                rows.extend([p["w"], p["b"]])
                mlp_layout.append(("lin", off, nw))
                off += nw + 1
        layout.append(tuple(mlp_layout))
    return jnp.concatenate(rows, axis=0), tuple(layout)


class GraphCNNPallas:
    def __init__(self, num_layers, num_mlp_layers, input_dim, hidden_dim, key):
        self.num_layers = num_layers
        self.num_mlp_layers = num_mlp_layers
        self.hidden_dim = hidden_dim
        conv_layers = []
        for layer in range(num_layers - 1):
            in_dim = input_dim if layer == 0 else hidden_dim
            mlp, key = _init_mlp_params(key, num_mlp_layers, in_dim, hidden_dim, hidden_dim)
            conv_layers.append(mlp)
        self.conv_layer_params = conv_layers          # structured (for the pure-JAX reference)
        self.param_slab, layout = _build_param_slab(conv_layers)
        self._forward = jax.jit(
            functools.partial(_forward_impl, layout=layout, hidden_dim=hidden_dim)
        )

    def forward(self, x, adj, graph_pool):
        """x: (B, N, D_in), adj: (B, N, N), graph_pool: (B, G, N)."""
        return self._forward(x, adj, graph_pool, self.param_slab)


# ---------------------------------------------------------------------------
# Pure-JAX reference (exact PyTorch semantics, biases included) for correctness
# ---------------------------------------------------------------------------

def _reference_forward(x, adj, graph_pool, conv_layer_params):
    h = x
    for mlp in conv_layer_params:
        z = adj @ h
        for p in mlp:
            z = z @ p["w"] + p["b"]
            if "gamma" in p:
                mean = jnp.mean(z, axis=0, keepdims=True)
                var = jnp.mean((z - mean) ** 2, axis=0, keepdims=True)
                z = (z - mean) / jnp.sqrt(var + 1e-5) * p["gamma"] + p["beta"]
                z = jnp.maximum(z, 0.0)
        h = jnp.where(z > 0, z, 0.01 * z)
    return graph_pool @ h, h


# ---------------------------------------------------------------------------
# Main
# ---------------------------------------------------------------------------

if __name__ == "__main__":
    key = jax.random.PRNGKey(0)

    num_layers = 3        # includes input layer -> 2 graph-conv layers
    num_mlp_layers = 2
    input_dim = 4
    hidden_dim = 32
    n_nodes = 24
    n_graphs = 2          # graphs per pooled instance (rows of graph_pool)
    batch = 2             # independent instances batched through the grid

    k_model, k_x, k_adj = jax.random.split(key, 3)

    model = GraphCNNPallas(num_layers, num_mlp_layers, input_dim, hidden_dim, k_model)

    x = jax.random.normal(k_x, (batch, n_nodes, input_dim), jnp.float32)

    # random 0/1 adjacency with self loops (dense float, as passed to torch.mm)
    adj = (jax.random.uniform(k_adj, (batch, n_nodes, n_nodes)) < 0.2).astype(jnp.float32)
    adj = jnp.maximum(adj, jnp.eye(n_nodes, dtype=jnp.float32)[None])

    # average-pooling matrix: graph g owns a contiguous slice of nodes
    per_graph = n_nodes // n_graphs
    gp_single = jnp.zeros((n_graphs, n_nodes), jnp.float32)
    for g in range(n_graphs):
        gp_single = gp_single.at[g, g * per_graph:(g + 1) * per_graph].set(1.0 / per_graph)
    graph_pool = jnp.stack([gp_single] * batch)

    pooled_h, h_nodes = model.forward(x, adj, graph_pool)
    jax.block_until_ready(pooled_h)
    jax.block_until_ready(h_nodes)

    assert pooled_h.shape == (batch, n_graphs, hidden_dim)
    assert h_nodes.shape == (batch, n_nodes, hidden_dim)
    assert bool(jnp.all(jnp.isfinite(pooled_h))) and bool(jnp.all(jnp.isfinite(h_nodes)))

    # correctness vs pure-JAX reference (per instance; reference keeps the pre-BN bias,
    # which the kernel drops -- exact in real arithmetic, so 1e-4 tolerance holds)
    for b in range(batch):
        ref_pooled, ref_nodes = _reference_forward(
            x[b], adj[b], graph_pool[b], model.conv_layer_params)
        assert bool(jnp.allclose(pooled_h[b], ref_pooled, atol=1e-4, rtol=1e-4)), \
            f"pooled_h mismatch at instance {b}"
        assert bool(jnp.allclose(h_nodes[b], ref_nodes, atol=1e-4, rtol=1e-4)), \
            f"h_nodes mismatch at instance {b}"

    print("KERNEL_OK")
</pallas_src>

<mosaic_0001>
module attributes {stable_mosaic.version = 11 : i64} {
  func.func @_fused_graphcnn_kernel(%arg0: i32, %arg1: memref<1x24x4xf32, #tpu.memory_space<vmem>>, %arg2: memref<1x24x24xf32, #tpu.memory_space<vmem>>, %arg3: memref<1x2x24xf32, #tpu.memory_space<vmem>>, %arg4: memref<106x32xf32, #tpu.memory_space<vmem>>, %arg5: memref<1x2x32xf32, #tpu.memory_space<vmem>>, %arg6: memref<1x24x32xf32, #tpu.memory_space<vmem>>) attributes {dimension_semantics = [#tpu.dimension_semantics<parallel>], iteration_bounds = array<i64: 2>, scalar_prefetch = 0 : i64, scratch_operands = 0 : i64, tpu.core_type = #tpu.core_type<tc>, window_params = [{transform_indices = @transform_0, window_bounds = array<i64: 1, 24, 4>}, {transform_indices = @transform_1, window_bounds = array<i64: 1, 24, 24>}, {transform_indices = @transform_2, window_bounds = array<i64: 1, 2, 24>}, {pipeline_mode = #tpu.pipeline_mode<synchronous>, transform_indices = @transform_3, window_bounds = array<i64: 106, 32>}, {transform_indices = @transform_4, window_bounds = array<i64: 1, 2, 32>}, {transform_indices = @transform_5, window_bounds = array<i64: 1, 24, 32>}]} {
    %c0 = arith.constant 0 : index
    %c0_0 = arith.constant 0 : index
    %c0_1 = arith.constant 0 : index
    %0 = vector.load %arg2[%c0, %c0_0, %c0_1] : memref<1x24x24xf32, #tpu.memory_space<vmem>>, vector<1x24x24xf32>
    %1 = vector.shape_cast %0 : vector<1x24x24xf32> to vector<24x24xf32>
    %c0_2 = arith.constant 0 : index
    %c0_3 = arith.constant 0 : index
    %c0_4 = arith.constant 0 : index
    %2 = vector.load %arg1[%c0_2, %c0_3, %c0_4] : memref<1x24x4xf32, #tpu.memory_space<vmem>>, vector<1x24x4xf32>
    %3 = vector.shape_cast %2 : vector<1x24x4xf32> to vector<24x4xf32>
    %c0_5 = arith.constant 0 : index
    %c0_6 = arith.constant 0 : index
    %4 = vector.load %arg4[%c0_5, %c0_6] : memref<106x32xf32, #tpu.memory_space<vmem>>, vector<106x32xf32>
    %cst = arith.constant dense<0.000000e+00> : vector<24x4xf32>
    %5 = tpu.matmul %1, %3, %cst {dimension_numbers = #tpu.dot_dimension_numbers<[1], [0], [0], [1], [0, 0, 1, 1], [], []>} : vector<24x24xf32>, vector<24x4xf32>, vector<24x4xf32> -> vector<24x4xf32>
    %6 = vector.extract_strided_slice %4 {offsets = [0, 0], sizes = [4, 32], strides = [1, 1]} : vector<106x32xf32> to vector<4x32xf32>
    %7 = vector.extract_strided_slice %4 {offsets = [4, 0], sizes = [1, 32], strides = [1, 1]} : vector<106x32xf32> to vector<1x32xf32>
    %8 = vector.extract_strided_slice %4 {offsets = [5, 0], sizes = [1, 32], strides = [1, 1]} : vector<106x32xf32> to vector<1x32xf32>
    %cst_7 = arith.constant dense<0.000000e+00> : vector<24x32xf32>
    %9 = tpu.matmul %5, %6, %cst_7 {dimension_numbers = #tpu.dot_dimension_numbers<[1], [0], [0], [1], [0, 0, 1, 1], [], []>} : vector<24x4xf32>, vector<4x32xf32>, vector<24x32xf32> -> vector<24x32xf32>
    %cst_8 = arith.constant dense<0.000000e+00> : vector<32xf32>
    %10 = vector.multi_reduction <add>, %9, %cst_8 [0] : vector<24x32xf32> to vector<32xf32>
    %11 = vector.shape_cast %10 : vector<32xf32> to vector<1x32xf32>
    %cst_9 = arith.constant 2.400000e+01 : f32
    %12 = vector.broadcast %cst_9 : f32 to vector<1x32xf32>
    %13 = arith.divf %11, %12 : vector<1x32xf32>
    %14 = arith.mulf %9, %9 : vector<24x32xf32>
    %cst_10 = arith.constant dense<0.000000e+00> : vector<32xf32>
    %15 = vector.multi_reduction <add>, %14, %cst_10 [0] : vector<24x32xf32> to vector<32xf32>
    %16 = vector.shape_cast %15 : vector<32xf32> to vector<1x32xf32>
    %cst_11 = arith.constant 2.400000e+01 : f32
    %17 = vector.broadcast %cst_11 : f32 to vector<1x32xf32>
    %18 = arith.divf %16, %17 : vector<1x32xf32>
    %19 = arith.mulf %13, %13 : vector<1x32xf32>
    %20 = arith.subf %18, %19 : vector<1x32xf32>
    %cst_12 = arith.constant 9.99999974E-6 : f32
    %21 = vector.broadcast %cst_12 : f32 to vector<1x32xf32>
    %22 = arith.addf %20, %21 : vector<1x32xf32>
    %23 = math.rsqrt %22 : vector<1x32xf32>
    %24 = arith.mulf %7, %23 : vector<1x32xf32>
    %25 = arith.mulf %13, %24 : vector<1x32xf32>
    %26 = arith.subf %8, %25 : vector<1x32xf32>
    %27 = vector.broadcast %24 : vector<1x32xf32> to vector<24x32xf32>
    %28 = arith.mulf %9, %27 : vector<24x32xf32>
    %29 = vector.broadcast %26 : vector<1x32xf32> to vector<24x32xf32>
    %30 = arith.addf %28, %29 : vector<24x32xf32>
    %cst_13 = arith.constant 0.000000e+00 : f32
    %31 = vector.broadcast %cst_13 : f32 to vector<24x32xf32>
    %32 = arith.maximumf %30, %31 : vector<24x32xf32>
    %33 = vector.extract_strided_slice %4 {offsets = [6, 0], sizes = [32, 32], strides = [1, 1]} : vector<106x32xf32> to vector<32x32xf32>
    %34 = vector.extract_strided_slice %4 {offsets = [38, 0], sizes = [1, 32], strides = [1, 1]} : vector<106x32xf32> to vector<1x32xf32>
    %cst_14 = arith.constant dense<0.000000e+00> : vector<24x32xf32>
    %35 = tpu.matmul %32, %33, %cst_14 {dimension_numbers = #tpu.dot_dimension_numbers<[1], [0], [0], [1], [0, 0, 1, 1], [], []>} : vector<24x32xf32>, vector<32x32xf32>, vector<24x32xf32> -> vector<24x32xf32>
    %36 = vector.broadcast %34 : vector<1x32xf32> to vector<24x32xf32>
    %37 = arith.addf %35, %36 : vector<24x32xf32>
    %cst_15 = arith.constant 0.00999999977 : f32
    %38 = vector.broadcast %cst_15 : f32 to vector<24x32xf32>
    %39 = arith.mulf %38, %37 : vector<24x32xf32>
    %40 = arith.maximumf %37, %39 : vector<24x32xf32>
    %cst_16 = arith.constant dense<0.000000e+00> : vector<24x32xf32>
    %41 = tpu.matmul %1, %40, %cst_16 {dimension_numbers = #tpu.dot_dimension_numbers<[1], [0], [0], [1], [0, 0, 1, 1], [], []>} : vector<24x24xf32>, vector<24x32xf32>, vector<24x32xf32> -> vector<24x32xf32>
    %42 = vector.extract_strided_slice %4 {offsets = [39, 0], sizes = [32, 32], strides = [1, 1]} : vector<106x32xf32> to vector<32x32xf32>
    %43 = vector.extract_strided_slice %4 {offsets = [71, 0], sizes = [1, 32], strides = [1, 1]} : vector<106x32xf32> to vector<1x32xf32>
    %44 = vector.extract_strided_slice %4 {offsets = [72, 0], sizes = [1, 32], strides = [1, 1]} : vector<106x32xf32> to vector<1x32xf32>
    %cst_17 = arith.constant dense<0.000000e+00> : vector<24x32xf32>
    %45 = tpu.matmul %41, %42, %cst_17 {dimension_numbers = #tpu.dot_dimension_numbers<[1], [0], [0], [1], [0, 0, 1, 1], [], []>} : vector<24x32xf32>, vector<32x32xf32>, vector<24x32xf32> -> vector<24x32xf32>
    %cst_18 = arith.constant dense<0.000000e+00> : vector<32xf32>
    %46 = vector.multi_reduction <add>, %45, %cst_18 [0] : vector<24x32xf32> to vector<32xf32>
    %47 = vector.shape_cast %46 : vector<32xf32> to vector<1x32xf32>
    %cst_19 = arith.constant 2.400000e+01 : f32
    %48 = vector.broadcast %cst_19 : f32 to vector<1x32xf32>
    %49 = arith.divf %47, %48 : vector<1x32xf32>
    %50 = arith.mulf %45, %45 : vector<24x32xf32>
    %cst_20 = arith.constant dense<0.000000e+00> : vector<32xf32>
    %51 = vector.multi_reduction <add>, %50, %cst_20 [0] : vector<24x32xf32> to vector<32xf32>
    %52 = vector.shape_cast %51 : vector<32xf32> to vector<1x32xf32>
    %cst_21 = arith.constant 2.400000e+01 : f32
    %53 = vector.broadcast %cst_21 : f32 to vector<1x32xf32>
    %54 = arith.divf %52, %53 : vector<1x32xf32>
    %55 = arith.mulf %49, %49 : vector<1x32xf32>
    %56 = arith.subf %54, %55 : vector<1x32xf32>
    %cst_22 = arith.constant 9.99999974E-6 : f32
    %57 = vector.broadcast %cst_22 : f32 to vector<1x32xf32>
    %58 = arith.addf %56, %57 : vector<1x32xf32>
    %59 = math.rsqrt %58 : vector<1x32xf32>
    %60 = arith.mulf %43, %59 : vector<1x32xf32>
    %61 = arith.mulf %49, %60 : vector<1x32xf32>
    %62 = arith.subf %44, %61 : vector<1x32xf32>
    %63 = vector.broadcast %60 : vector<1x32xf32> to vector<24x32xf32>
    %64 = arith.mulf %45, %63 : vector<24x32xf32>
    %65 = vector.broadcast %62 : vector<1x32xf32> to vector<24x32xf32>
    %66 = arith.addf %64, %65 : vector<24x32xf32>
    %cst_23 = arith.constant 0.000000e+00 : f32
    %67 = vector.broadcast %cst_23 : f32 to vector<24x32xf32>
    %68 = arith.maximumf %66, %67 : vector<24x32xf32>
    %69 = vector.extract_strided_slice %4 {offsets = [73, 0], sizes = [32, 32], strides = [1, 1]} : vector<106x32xf32> to vector<32x32xf32>
    %70 = vector.extract_strided_slice %4 {offsets = [105, 0], sizes = [1, 32], strides = [1, 1]} : vector<106x32xf32> to vector<1x32xf32>
    %cst_24 = arith.constant dense<0.000000e+00> : vector<24x32xf32>
    %71 = tpu.matmul %68, %69, %cst_24 {dimension_numbers = #tpu.dot_dimension_numbers<[1], [0], [0], [1], [0, 0, 1, 1], [], []>} : vector<24x32xf32>, vector<32x32xf32>, vector<24x32xf32> -> vector<24x32xf32>
    %72 = vector.broadcast %70 : vector<1x32xf32> to vector<24x32xf32>
    %73 = arith.addf %71, %72 : vector<24x32xf32>
    %cst_25 = arith.constant 0.00999999977 : f32
    %74 = vector.broadcast %cst_25 : f32 to vector<24x32xf32>
    %75 = arith.mulf %74, %73 : vector<24x32xf32>
    %76 = arith.maximumf %73, %75 : vector<24x32xf32>
    %c0_26 = arith.constant 0 : index
    %c0_27 = arith.constant 0 : index
    %c0_28 = arith.constant 0 : index
    %77 = vector.load %arg6[%c0_26, %c0_27, %c0_28] : memref<1x24x32xf32, #tpu.memory_space<vmem>>, vector<1x24x32xf32>
    %78 = vector.shape_cast %77 : vector<1x24x32xf32> to vector<24x32xf32>
    %79 = vector.shape_cast %76 : vector<24x32xf32> to vector<1x24x32xf32>
    tpu.vector_store %arg6[%c0_26, %c0_27, %c0_28], %79 {strides = array<i32>} : memref<1x24x32xf32, #tpu.memory_space<vmem>>, vector<1x24x32xf32>,
    %c0_29 = arith.constant 0 : index
    %c0_30 = arith.constant 0 : index
    %c0_31 = arith.constant 0 : index
    %80 = vector.load %arg3[%c0_29, %c0_30, %c0_31] : memref<1x2x24xf32, #tpu.memory_space<vmem>>, vector<1x2x24xf32>
    %81 = vector.shape_cast %80 : vector<1x2x24xf32> to vector<2x24xf32>
    %cst_32 = arith.constant dense<0.000000e+00> : vector<2x32xf32>
    %82 = tpu.matmul %81, %76, %cst_32 {dimension_numbers = #tpu.dot_dimension_numbers<[1], [0], [0], [1], [0, 0, 1, 1], [], []>} : vector<2x24xf32>, vector<24x32xf32>, vector<2x32xf32> -> vector<2x32xf32>
    %c0_33 = arith.constant 0 : index
    %c0_34 = arith.constant 0 : index
    %c0_35 = arith.constant 0 : index
    %83 = vector.load %arg5[%c0_33, %c0_34, %c0_35] : memref<1x2x32xf32, #tpu.memory_space<vmem>>, vector<1x2x32xf32>
    %84 = vector.shape_cast %83 : vector<1x2x32xf32> to vector<2x32xf32>
    %85 = vector.shape_cast %82 : vector<2x32xf32> to vector<1x2x32xf32>
    tpu.vector_store %arg5[%c0_33, %c0_34, %c0_35], %85 {strides = array<i32>} : memref<1x2x32xf32, #tpu.memory_space<vmem>>, vector<1x2x32xf32>,
    return
  }
  func.func @transform_0(%arg0: i32) -> (i32, i32, i32) {
    %c0_i32 = arith.constant 0 : i32
    %c0_i32_0 = arith.constant 0 : i32
    %c0_i32_1 = arith.constant 0 : i32
    return %arg0, %c0_i32, %c0_i32_0 : i32, i32, i32
  }
  func.func @transform_1(%arg0: i32) -> (i32, i32, i32) {
    %c0_i32 = arith.constant 0 : i32
    %c0_i32_0 = arith.constant 0 : i32
    %c0_i32_1 = arith.constant 0 : i32
    return %arg0, %c0_i32, %c0_i32_0 : i32, i32, i32
  }
  func.func @transform_2(%arg0: i32) -> (i32, i32, i32) {
    %c0_i32 = arith.constant 0 : i32
    %c0_i32_0 = arith.constant 0 : i32
    %c0_i32_1 = arith.constant 0 : i32
    return %arg0, %c0_i32, %c0_i32_0 : i32, i32, i32
  }
  func.func @transform_3(%arg0: i32) -> (i32, i32) {
    %c0_i32 = arith.constant 0 : i32
    %c0_i32_0 = arith.constant 0 : i32
    %c0_i32_1 = arith.constant 0 : i32
    return %c0_i32, %c0_i32_0 : i32, i32
  }
  func.func @transform_4(%arg0: i32) -> (i32, i32, i32) {
    %c0_i32 = arith.constant 0 : i32
    %c0_i32_0 = arith.constant 0 : i32
    %c0_i32_1 = arith.constant 0 : i32
    return %arg0, %c0_i32, %c0_i32_0 : i32, i32, i32
  }
  func.func @transform_5(%arg0: i32) -> (i32, i32, i32) {
    %c0_i32 = arith.constant 0 : i32
    %c0_i32_0 = arith.constant 0 : i32
    %c0_i32_1 = arith.constant 0 : i32
    return %arg0, %c0_i32, %c0_i32_0 : i32, i32, i32
  }
}

</mosaic_0001>

<llo_original>
// kernel: _forward_impl.1
$region0: #{_forward_impl.1}
  #allocation0 [shape = 'u32[]', space=smem, size = 0x4, offset = 0x4, fixed_abs, tag = 'smem constant byte address 0x4 - core index']
  #allocation1 [shape = 'u32[144,128]{1,0:T(1,128)}', space=vmem, size = 0x12000, scoped, tag = 'internal scratch']
  %s0 = inlined_call_operand.vmem [shape: f32[2,24,4], index: 0, kind: input, shape index: {}]
  %s1 = inlined_call_operand.vmem [shape: f32[2,24,24], index: 1, kind: input, shape index: {}]
  %s2 = inlined_call_operand.vmem [shape: f32[2,2,24], index: 2, kind: input, shape index: {}]
  %s3 = inlined_call_operand.vmem [shape: f32[106,32], index: 3, kind: input, shape index: {}]
  %s4 = inlined_call_operand.hbm [shape: f32[2,2,32], index: 4, kind: output, shape index: {0}]
  %s5 = inlined_call_operand.hbm [shape: f32[2,24,32], index: 5, kind: output, shape index: {1}]
  %6 = xla_tuple %s4, %s5
  %s7 = sld [smem:[#allocation0]]
  $region57: #{_forward_impl.1} parent=0
    _
  %s9 = ssub.s32 1, %s7
  %s10 = scalar_select 0, %s9, %s7
  $region1: #{_forward_impl.1} parent=0
    #allocation2 [shape = 'u8[2048]{0}', space=vmem, size = 0x800, scoped, tag = 'output window, operand 0']
    #allocation3 [shape = 's32[2]{0}', space=sflag, size = 0x8, scoped, tag = 'scoped memory for _forward_impl.1']
    #allocation4 [shape = 'u8[24576]{0}', space=vmem, size = 0x6000, scoped, tag = 'output window, operand 1']
    #allocation5 [shape = 's32[2]{0}', space=sflag, size = 0x8, scoped, tag = 'scoped memory for _forward_impl.1']
    %11 = vsyncpa [#allocation3], 0
    %s12 = scalar_lea.sflag [#allocation3], 1
    %13 = vsyncpa %s12, 0
    %14 = vsyncpa [#allocation5], 0
    %s15 = scalar_lea.sflag [#allocation5], 1
    %16 = vsyncpa %s15, 0
    loop: start=0, step=1, limit=4
    $region2: #{_forward_impl.1} parent=1 // loop_pre_header
      _
    $region3: #{_forward_impl.1} parent=1 // loop_header
      %s18 = sphi 0, %s22
      %p19 = scmp.ge.s32.totalorder %s18, 4
      %s28 = sphi 0, %s30
      %s31 = sphi 0, %s28
      %s32 = sphi 0, %s31
      %s48 = sphi 0, %s32
      %s54 = sphi 0, %s56
      %s57 = sphi 0, %s54
      %s58 = sphi 0, %s57
      %s74 = sphi 0, %s58
      %s80 = sphi 0, %s82
      %s83 = sphi 0, %s80
      %s84 = sphi 0, %s83
      %s100 = sphi 0, %s84
      %s104 = sphi 0, %s104
      %s106 = sphi 0, %s104
      %s107 = sphi 0, %s106
      %s121 = sphi 0, %s107
      %s127 = sphi 0, %s129
      %s130 = sphi 0, %s127
      %s131 = sphi 0, %s130
      %s147 = sphi 0, %s131
      %s153 = sphi 0, %s155
      %s156 = sphi 0, %s153
      %s157 = sphi 0, %s156
      %s173 = sphi 0, %s157
    $region4: #{_forward_impl.1} parent=1 // loop_header_branch
      %21 = sbr.rel (%p19) target = $region8
    $region5: #{_forward_impl.1} parent=1 // loop_body
      %s23 = ssub.s32 %s18, 1
      %s24 = ssub.s32 %s18, 2
      %s25 = sadd.s32 %s18, 1
      %s26 = ssub.s32 %s18, %s25
      %p27 = scmp.eq.s32.totalorder %s26, 0
      %s29 = sadd.s32 %s28, 1
      %s30 = scalar_select %p27, %s28, %s29
      %p33 = pneg %p27
      %p34 = scmp.eq.s32.totalorder %s18, 1
      %p35 = por %p33, %p34
      %p36 = scmp.ne.s32.totalorder %s28, %s31
      %p37 = scmp.eq.s32.totalorder %s18, 0
      %p38 = por %p36, %p37
      %p39 = scmp.ne.s32.totalorder %s28, %s31
      %p40 = scmp.eq.s32.totalorder %s23, 1
      %p41 = por %p39, %p40
      %p42 = scmp.ne.s32.totalorder %s31, %s32
      %p43 = scmp.eq.s32.totalorder %s23, 0
      %p44 = por %p42, %p43
      %p45 = scmp.ne.s32.totalorder %s31, %s32
      %p46 = scmp.eq.s32.totalorder %s24, 1
      %p47 = por %p45, %p46
      %p49 = scmp.ne.s32.totalorder %s32, %s48
      %p50 = scmp.eq.s32.totalorder %s24, 0
      %p51 = por %p49, %p50
      %s52 = ssub.s32 %s18, %s25
      %p53 = scmp.eq.s32.totalorder %s52, 0
      %s55 = sadd.s32 %s54, 1
      %s56 = scalar_select %p53, %s54, %s55
      %p59 = pneg %p53
      %p60 = scmp.eq.s32.totalorder %s18, 1
      %p61 = por %p59, %p60
      %p62 = scmp.ne.s32.totalorder %s54, %s57
      %p63 = scmp.eq.s32.totalorder %s18, 0
      %p64 = por %p62, %p63
      %p65 = scmp.ne.s32.totalorder %s54, %s57
      %p66 = scmp.eq.s32.totalorder %s23, 1
      %p67 = por %p65, %p66
      %p68 = scmp.ne.s32.totalorder %s57, %s58
      %p69 = scmp.eq.s32.totalorder %s23, 0
      %p70 = por %p68, %p69
      %p71 = scmp.ne.s32.totalorder %s57, %s58
      %p72 = scmp.eq.s32.totalorder %s24, 1
      %p73 = por %p71, %p72
      %p75 = scmp.ne.s32.totalorder %s58, %s74
      %p76 = scmp.eq.s32.totalorder %s24, 0
      %p77 = por %p75, %p76
      %s78 = ssub.s32 %s18, %s25
      %p79 = scmp.eq.s32.totalorder %s78, 0
      %s81 = sadd.s32 %s80, 1
      %s82 = scalar_select %p79, %s80, %s81
      %p85 = pneg %p79
      %p86 = scmp.eq.s32.totalorder %s18, 1
      %p87 = por %p85, %p86
      %p88 = scmp.ne.s32.totalorder %s80, %s83
      %p89 = scmp.eq.s32.totalorder %s18, 0
      %p90 = por %p88, %p89
      %p91 = scmp.ne.s32.totalorder %s80, %s83
      %p92 = scmp.eq.s32.totalorder %s23, 1
      %p93 = por %p91, %p92
      %p94 = scmp.ne.s32.totalorder %s83, %s84
      %p95 = scmp.eq.s32.totalorder %s23, 0
      %p96 = por %p94, %p95
      %p97 = scmp.ne.s32.totalorder %s83, %s84
      %p98 = scmp.eq.s32.totalorder %s24, 1
      %p99 = por %p97, %p98
      %p101 = scmp.ne.s32.totalorder %s84, %s100
      %p102 = scmp.eq.s32.totalorder %s24, 0
      %p103 = por %p101, %p102
      %s105 = sadd.s32 %s104, 1
      %p108 = scmp.eq.s32.totalorder %s18, 1
      %p109 = scmp.ne.s32.totalorder %s104, %s106
      %p110 = scmp.eq.s32.totalorder %s18, 0
      %p111 = por %p109, %p110
      %p112 = scmp.ne.s32.totalorder %s104, %s106
      %p113 = scmp.eq.s32.totalorder %s23, 1
      %p114 = por %p112, %p113
      %p115 = scmp.ne.s32.totalorder %s106, %s107
      %p116 = scmp.eq.s32.totalorder %s23, 0
      %p117 = por %p115, %p116
      %p118 = scmp.ne.s32.totalorder %s106, %s107
      %p119 = scmp.eq.s32.totalorder %s24, 1
      %p120 = por %p118, %p119
      %p122 = scmp.ne.s32.totalorder %s107, %s121
      %p123 = scmp.eq.s32.totalorder %s24, 0
      %p124 = por %p122, %p123
      %s125 = ssub.s32 %s18, %s25
      %p126 = scmp.eq.s32.totalorder %s125, 0
      %s128 = sadd.s32 %s127, 1
      %s129 = scalar_select %p126, %s127, %s128
      %p132 = pneg %p126
      %p133 = scmp.eq.s32.totalorder %s18, 1
      %p134 = por %p132, %p133
      %p135 = scmp.ne.s32.totalorder %s127, %s130
      %p136 = scmp.eq.s32.totalorder %s18, 0
      %p137 = por %p135, %p136
      %p138 = scmp.ne.s32.totalorder %s127, %s130
      %p139 = scmp.eq.s32.totalorder %s23, 1
      %p140 = por %p138, %p139
      %p141 = scmp.ne.s32.totalorder %s130, %s131
      %p142 = scmp.eq.s32.totalorder %s23, 0
      %p143 = por %p141, %p142
      %p144 = scmp.ne.s32.totalorder %s130, %s131
      %p145 = scmp.eq.s32.totalorder %s24, 1
      %p146 = por %p144, %p145
      %p148 = scmp.ne.s32.totalorder %s131, %s147
      %p149 = scmp.eq.s32.totalorder %s24, 0
      %p150 = por %p148, %p149
      %s151 = ssub.s32 %s18, %s25
      %p152 = scmp.eq.s32.totalorder %s151, 0
      %s154 = sadd.s32 %s153, 1
      %s155 = scalar_select %p152, %s153, %s154
      %p158 = pneg %p152
      %p159 = scmp.eq.s32.totalorder %s18, 1
      %p160 = por %p158, %p159
      %p161 = scmp.ne.s32.totalorder %s153, %s156
      %p162 = scmp.eq.s32.totalorder %s18, 0
      %p163 = por %p161, %p162
      %p164 = scmp.ne.s32.totalorder %s153, %s156
      %p165 = scmp.eq.s32.totalorder %s23, 1
      %p166 = por %p164, %p165
      %p167 = scmp.ne.s32.totalorder %s156, %s157
      %p168 = scmp.eq.s32.totalorder %s23, 0
      %p169 = por %p167, %p168
      %p170 = scmp.ne.s32.totalorder %s156, %s157
      %p171 = scmp.eq.s32.totalorder %s24, 1
      %p172 = por %p170, %p171
      %p174 = scmp.ne.s32.totalorder %s157, %s173
      %p175 = scmp.eq.s32.totalorder %s24, 0
      %p176 = por %p174, %p175
      %p177 = scmp.le.s32.totalorder 1, %s18
      %p178 = scmp.lt.s32.totalorder %s18, 3
      %p179 = pnand %p177, %p178
      %p180 = pneg %p179
      // Predicated region
      $region9: #{_forward_impl.1} parent=5 // pred_check
        _
      $region10: #{_forward_impl.1} parent=5 // pred_check_branch
        %182 = sbr.rel (%p179) target = $region12
      $region11: #{_forward_impl.1} parent=5 // pred_region
        %s183 = ssub.s32 %s18, 1
        // Predicated region
        $region13: #{_forward_impl.1} parent=11 // pred_check
          %p184 = pneg %p117
        $region14: #{_forward_impl.1} parent=11 // pred_check_branch
          %186 = sbr.rel (%p184) target = $region16
        $region15: #{_forward_impl.1} parent=11 // pred_region
          _
        $region16: #{_forward_impl.1} parent=11 // pred_fallthru
          _
      $region12: #{_forward_impl.1} parent=5 // pred_fallthru
        _
      %p187 = scmp.lt.s32.totalorder %s18, 2
      // Predicated region
      $region17: #{_forward_impl.1} parent=5 // pred_check
        %p188 = pneg %p187
      $region18: #{_forward_impl.1} parent=5 // pred_check_branch
        %190 = sbr.rel (%p188) target = $region20
      $region19: #{_forward_impl.1} parent=5 // pred_region
        // Predicated region
        $region21: #{_forward_impl.1} parent=19 // pred_check
          %p191 = pneg %p38
        $region22: #{_forward_impl.1} parent=19 // pred_check_branch
          %193 = sbr.rel (%p191) target = $region24
        $region23: #{_forward_impl.1} parent=19 // pred_region
          %p194 = scmp.lt.s32.totalorder %s18, 1
          %s195 = scalar_select %p194, %s18, 1
          %s196 = smul.addr %s195, 3
          %s197 = smul.addr %s196, 8
          %s198 = scalar_lea.vmem %s0, %s197
        $region24: #{_forward_impl.1} parent=19 // pred_fallthru
          _
        // Predicated region
        $region25: #{_forward_impl.1} parent=19 // pred_check
          %p199 = pneg %p64
        $region26: #{_forward_impl.1} parent=19 // pred_check_branch
          %201 = sbr.rel (%p199) target = $region28
        $region27: #{_forward_impl.1} parent=19 // pred_region
          %p202 = scmp.lt.s32.totalorder %s18, 1
          %s203 = scalar_select %p202, %s18, 1
          %s204 = smul.addr %s203, 3
          %s205 = smul.addr %s204, 8
          %s206 = scalar_lea.vmem %s1, %s205
        $region28: #{_forward_impl.1} parent=19 // pred_fallthru
          _
        // Predicated region
        $region29: #{_forward_impl.1} parent=19 // pred_check
          %p207 = pneg %p90
        $region30: #{_forward_impl.1} parent=19 // pred_check_branch
          %209 = sbr.rel (%p207) target = $region32
        $region31: #{_forward_impl.1} parent=19 // pred_region
          %p210 = scmp.lt.s32.totalorder %s18, 1
          %s211 = scalar_select %p210, %s18, 1
          %s212 = smul.addr %s211, 2
          %s213 = scalar_lea.vmem %s2, %s212
        $region32: #{_forward_impl.1} parent=19 // pred_fallthru
          _
      $region20: #{_forward_impl.1} parent=5 // pred_fallthru
        _
      %p214 = scmp.le.s32.totalorder 1, %s18
      %p215 = scmp.lt.s32.totalorder %s18, 3
      %p216 = pnand %p214, %p215
      %p217 = pneg %p216
      // Predicated region
      $region33: #{_forward_impl.1} parent=5 // pred_check
        _
      $region34: #{_forward_impl.1} parent=5 // pred_check_branch
        %219 = sbr.rel (%p216) target = $region36
      $region35: #{_forward_impl.1} parent=5 // pred_region
        %s220 = ssub.s32 %s18, 1
        %p221 = scmp.lt.s32.totalorder %s23, 1
        %s222 = scalar_select %p221, %s23, 1
        %s223 = smul.addr %s222, 3
        %s224 = smul.addr %s223, 8
        %s225 = scalar_lea.vmem %s0, %s224
        %p226 = pneg %p44
        %p227 = pneg %p41
        %p228 = scmp.lt.s32.totalorder %s23, 1
        %s229 = scalar_select %p228, %s23, 1
        %s230 = smul.addr %s229, 3
        %s231 = smul.addr %s230, 8
        %s232 = scalar_lea.vmem %s1, %s231
        %p233 = pneg %p70
        %p234 = pneg %p67
        %p235 = scmp.lt.s32.totalorder %s23, 1
        %s236 = scalar_select %p235, %s23, 1
        %s237 = smul.addr %s236, 2
        %s238 = scalar_lea.vmem %s2, %s237
        %p239 = pneg %p96
        %p240 = pneg %p93
        %p241 = pneg %p117
        %p242 = pneg %p114
        %p243 = pneg %p143
        %p244 = pneg %p140
        %s245 = sand.u32 %s130, 1
        %s246 = scalar_lea.sflag [#allocation3], %s245
        %s247 = sand.u32 %s130, 1
        %s248 = smul.addr %s247, 2
        %s249 = scalar_lea.vmem [#allocation2], %s248
        %p250 = pneg %p169
        %p251 = pneg %p166
        %s252 = sand.u32 %s156, 1
        %s253 = scalar_lea.sflag [#allocation5], %s252
        %s254 = sand.u32 %s156, 1
        %s255 = smul.addr %s254, 24
        %s256 = scalar_lea.vmem [#allocation4], %s255
        %p257 = scmp.lt.s32.totalorder %s23, 1
        %s258 = scalar_select %p257, %s23, 1
        %s259 = smul.addr %s258, 3
        %s260 = smul.addr %s259, 8
        %s261 = scalar_lea.vmem %s0, %s260
        %p262 = scmp.lt.s32.totalorder %s23, 1
        %s263 = scalar_select %p262, %s23, 1
        %s264 = smul.addr %s263, 3
        %s265 = smul.addr %s264, 8
        %s266 = scalar_lea.vmem %s1, %s265
        %p267 = scmp.lt.s32.totalorder %s23, 1
        %s268 = scalar_select %p267, %s23, 1
        %s269 = smul.addr %s268, 2
        %s270 = scalar_lea.vmem %s2, %s269
        %v271 = vld [vmem:[%s266] sm:$0xff]
        %v272 = vld [vmem:[%s266 + $0x8] sm:$0xff]
        %v273 = vld [vmem:[%s266 + $0x10] sm:$0xff]
        %v274 = vld [vmem:[%s261] sm:$0xff]
        %v275 = vld [vmem:[%s261 + $0x8] sm:$0xff]
        %v276 = vld [vmem:[%s261 + $0x10] sm:$0xff]
        %v277 = vld [vmem:[%s3] sm:$0xff]
        %v278 = vld [vmem:[%s3 + $0x8] sm:$0xff]
        %v279 = vld [vmem:[%s3 + $0x10] sm:$0xff]
        %v280 = vld [vmem:[%s3 + $0x18] sm:$0xff]
        %v281 = vld [vmem:[%s3 + $0x20] sm:$0xff]
        %v282 = vld [vmem:[%s3 + $0x28] sm:$0xff]
        %v283 = vld [vmem:[%s3 + $0x30] sm:$0xff]
        %v284 = vld [vmem:[%s3 + $0x38] sm:$0xff]
        %v285 = vld [vmem:[%s3 + $0x40] sm:$0xff]
        %v286 = vld [vmem:[%s3 + $0x48] sm:$0xff]
        %v287 = vld [vmem:[%s3 + $0x50] sm:$0xff]
        %v288 = vld [vmem:[%s3 + $0x58] sm:$0xff]
        %v289 = vld [vmem:[%s3 + $0x60] sm:$0xff]
        %v290 = vld [vmem:[%s3 + $0x68] sm:$0x3]
        %vm291 = vcmask 195584
        %v293 = vsel %vm291, %v271, 0
        %v296 = vsel %vm291, %v272, 0
        %v299 = vsel %vm291, %v273, 0
        %301 = vmatprep.subr.mxu0 0.0
        %302 = vmatpush1.msra.mxu0 %v274
        %303 = vmatprep.subr.mxu0 0.0
        %304 = vmatpush1.msra.mxu0 %v275
        %305 = vmatprep.subr.mxu0 0.0
        %306 = vmatpush1.msra.mxu0 %v276
        %307 = vmatprep.subr.mxu0 0.0
        %308 = vmatpush1.msra.mxu0 0.0
        %309 = vmatprep.subr.mxu0 0.0
        %310 = vmatpush1.msra.mxu0 0.0
        %311 = vmatprep.subr.mxu0 0.0
        %312 = vmatpush1.msra.mxu0 0.0
        %313 = vmatprep.subr.mxu0 0.0
        %314 = vmatpush1.msra.mxu0 0.0
        %315 = vmatprep.subr.mxu0 0.0
        %316 = vmatpush1.msra.mxu0 0.0
        %317 = vmatprep.subr.mxu0 0.0
        %318 = vmatpush1.msra.mxu0 0.0
        %319 = vmatprep.subr.mxu0 0.0
        %320 = vmatpush1.msra.mxu0 0.0
        %321 = vmatprep.subr.mxu0 0.0
        %322 = vmatpush1.msra.mxu0 0.0
        %323 = vmatprep.subr.mxu0 0.0
        %324 = vmatpush1.msra.mxu0 0.0
        %325 = vmatprep.subr.mxu0 0.0
        %326 = vmatpush1.msra.mxu0 0.0
        %327 = vmatprep.subr.mxu0 0.0
        %328 = vmatpush1.msra.mxu0 0.0
        %329 = vmatprep.subr.mxu0 0.0
        %330 = vmatpush1.msra.mxu0 0.0
        %331 = vmatprep.subr.mxu0 0.0
        %332 = vmatpush1.msra.mxu0 0.0
        %333 = vmatprep.subr.mxu0 0.0
        %334 = vmatpush1.msra.mxu0 0.0
        %335 = vmatprep.subr.mxu0 0.0
        %336 = vmatpush1.msra.mxu0 0.0
        %337 = vmatprep.subr.mxu0 0.0
        %338 = vmatpush1.msra.mxu0 0.0
        %339 = vmatprep.subr.mxu0 0.0
        %340 = vmatpush1.msra.mxu0 0.0
        %341 = vmatprep.subr.mxu0 0.0
        %342 = vmatpush1.msra.mxu0 0.0
        %343 = vmatprep.subr.mxu0 0.0
        %344 = vmatpush1.msra.mxu0 0.0
        %345 = vmatprep.subr.mxu0 0.0
        %346 = vmatpush1.msra.mxu0 0.0
        %347 = vmatprep.subr.mxu0 0.0
        %348 = vmatpush1.msra.mxu0 0.0
        %349 = vmatprep.subr.mxu0 0.0
        %350 = vmatpush1.msra.mxu0 0.0
        %351 = vmatprep.subr.mxu0 0.0
        %352 = vmatpush1.msra.mxu0 0.0
        %353 = vmatprep.subr.mxu0 0.0
        %354 = vmatpush1.msra.mxu0 0.0
        %355 = vmatprep.subr.mxu0 0.0
        %356 = vmatpush1.msra.mxu0 0.0
        %357 = vmatprep.subr.mxu0 0.0
        %358 = vmatpush1.msra.mxu0 0.0
        %359 = vmatprep.subr.mxu0 0.0
        %360 = vmatpush1.msra.mxu0 0.0
        %361 = vmatprep.subr.mxu0 0.0
        %362 = vmatpush1.msra.mxu0 0.0
        %363 = vmatprep.subr.mxu0 0.0
        %364 = vmatpush1.msra.mxu0 0.0
        %365 = vmatprep.mubr.f32.mxu0 0.0
        %366 = vmatmul.mubr.f32.gmra.mrb[0].mxu0 %v293
        %v367 = vpop.f32.mrb[0].mxu0
        %v368 = vadd.f32 0.0, %v367
        %v369 = vpop.f32.mrb[0].mxu0
        %370 = vmatprep.mubr.f32.mxu0 0.0
        %371 = vmatmul.mubr.f32.gmra.mrb[0].mxu0 %v296
        %v372 = vpop.f32.mrb[0].mxu0
        %v373 = vadd.f32 0.0, %v372
        %v374 = vpop.f32.mrb[0].mxu0
        %375 = vmatprep.mubr.f32.mxu0 0.0
        %376 = vmatmul.mubr.f32.gmra.mrb[0].mxu0 %v299
        %v377 = vpop.f32.mrb[0].mxu0
        %v378 = vadd.f32 0.0, %v377
        %v379 = vpop.f32.mrb[0].mxu0
        %380 = vdwg.mxu0
        %vm381 = vcmask 31744
        %v383 = vsel %vm381, %v368, 0
        %v386 = vsel %vm381, %v373, 0
        %v389 = vsel %vm381, %v378, 0
        %vm391 = vcmask 1043456
        %v393 = vsel %vm391, %v277, 0
        %395 = vmatprep.subr.mxu0 0.0
        %396 = vmatpush1.msra.mxu0 %v393
        %397 = vmatprep.subr.mxu0 0.0
        %398 = vmatpush1.msra.mxu0 0.0
        %399 = vmatprep.subr.mxu0 0.0
        %400 = vmatpush1.msra.mxu0 0.0
        %401 = vmatprep.subr.mxu0 0.0
        %402 = vmatpush1.msra.mxu0 0.0
        %403 = vmatprep.subr.mxu0 0.0
        %404 = vmatpush1.msra.mxu0 0.0
        %405 = vmatprep.subr.mxu0 0.0
        %406 = vmatpush1.msra.mxu0 0.0
        %407 = vmatprep.subr.mxu0 0.0
        %408 = vmatpush1.msra.mxu0 0.0
        %409 = vmatprep.subr.mxu0 0.0
        %410 = vmatpush1.msra.mxu0 0.0
        %411 = vmatprep.subr.mxu0 0.0
        %412 = vmatpush1.msra.mxu0 0.0
        %413 = vmatprep.subr.mxu0 0.0
        %414 = vmatpush1.msra.mxu0 0.0
        %415 = vmatprep.subr.mxu0 0.0
        %416 = vmatpush1.msra.mxu0 0.0
        %417 = vmatprep.subr.mxu0 0.0
        %418 = vmatpush1.msra.mxu0 0.0
        %419 = vmatprep.subr.mxu0 0.0
        %420 = vmatpush1.msra.mxu0 0.0
        %421 = vmatprep.subr.mxu0 0.0
        %422 = vmatpush1.msra.mxu0 0.0
        %423 = vmatprep.subr.mxu0 0.0
        %424 = vmatpush1.msra.mxu0 0.0
        %425 = vmatprep.subr.mxu0 0.0
        %426 = vmatpush1.msra.mxu0 0.0
        %427 = vmatprep.subr.mxu0 0.0
        %428 = vmatpush1.msra.mxu0 0.0
        %429 = vmatprep.subr.mxu0 0.0
        %430 = vmatpush1.msra.mxu0 0.0
        %431 = vmatprep.subr.mxu0 0.0
        %432 = vmatpush1.msra.mxu0 0.0
        %433 = vmatprep.subr.mxu0 0.0
        %434 = vmatpush1.msra.mxu0 0.0
        %435 = vmatprep.subr.mxu0 0.0
        %436 = vmatpush1.msra.mxu0 0.0
        %437 = vmatprep.subr.mxu0 0.0
        %438 = vmatpush1.msra.mxu0 0.0
        %439 = vmatprep.subr.mxu0 0.0
        %440 = vmatpush1.msra.mxu0 0.0
        %441 = vmatprep.subr.mxu0 0.0
        %442 = vmatpush1.msra.mxu0 0.0
        %443 = vmatprep.subr.mxu0 0.0
        %444 = vmatpush1.msra.mxu0 0.0
        %445 = vmatprep.subr.mxu0 0.0
        %446 = vmatpush1.msra.mxu0 0.0
        %447 = vmatprep.subr.mxu0 0.0
        %448 = vmatpush1.msra.mxu0 0.0
        %449 = vmatprep.subr.mxu0 0.0
        %450 = vmatpush1.msra.mxu0 0.0
        %451 = vmatprep.subr.mxu0 0.0
        %452 = vmatpush1.msra.mxu0 0.0
        %453 = vmatprep.subr.mxu0 0.0
        %454 = vmatpush1.msra.mxu0 0.0
        %455 = vmatprep.subr.mxu0 0.0
        %456 = vmatpush1.msra.mxu0 0.0
        %457 = vmatprep.subr.mxu0 0.0
        %458 = vmatpush1.msra.mxu0 0.0
        %459 = vmatprep.mubr.f32.mxu0 0.0
        %460 = vmatmul.mubr.f32.gmra.mrb[0].mxu0 %v383
        %v461 = vpop.f32.mrb[0].mxu0
        %v462 = vadd.f32 0.0, %v461
        %v463 = vpop.f32.mrb[0].mxu0
        %464 = vmatprep.mubr.f32.mxu0 0.0
        %465 = vmatmul.mubr.f32.gmra.mrb[0].mxu0 %v386
        %v466 = vpop.f32.mrb[0].mxu0
        %v467 = vadd.f32 0.0, %v466
        %v468 = vpop.f32.mrb[0].mxu0
        %469 = vmatprep.mubr.f32.mxu0 0.0
        %470 = vmatmul.mubr.f32.gmra.mrb[0].mxu0 %v389
        %v471 = vpop.f32.mrb[0].mxu0
        %v472 = vadd.f32 0.0, %v471
        %v473 = vpop.f32.mrb[0].mxu0
        %474 = vdwg.mxu0
        %vm475 = vcmask 261120
        %v476 = vsel %vm475, %v462, 0.0
        %v477 = vsel %vm475, %v467, 0.0
        %v478 = vadd.f32 %v476, %v477
        %v479 = vsel %vm475, %v472, 0.0
        %v480 = vadd.f32 %v478, %v479
        %v481 = vrot.slane %v480, 4
        %v482 = vadd.f32 %v480, %v481
        %v483 = vrot.slane %v482, 2
        %v484 = vadd.f32 %v482, %v483
        %v485 = vrot.slane %v484, 1
        %v486 = vadd.f32 %v484, %v485
        %v487 = vrcp.pop 24.0
        %v488 = vmul.f32 %v486, %v487
        %v489 = vmul.f32 %v462, %v462
        %v490 = vmul.f32 %v467, %v467
        %v491 = vmul.f32 %v472, %v472
        %v492 = vsel %vm475, %v489, 0.0
        %v493 = vsel %vm475, %v490, 0.0
        %v494 = vadd.f32 %v492, %v493
        %v495 = vsel %vm475, %v491, 0.0
        %v496 = vadd.f32 %v494, %v495
        %v497 = vrot.slane %v496, 4
        %v498 = vadd.f32 %v496, %v497
        %v499 = vrot.slane %v498, 2
        %v500 = vadd.f32 %v498, %v499
        %v501 = vrot.slane %v500, 1
        %v502 = vadd.f32 %v500, %v501
        %v503 = vmul.f32 %v502, %v487
        %v504 = vmul.f32 %v488, %v488
        %v505 = vsub.f32 %v503, %v504
        %v506 = vadd.f32 %v505, 1e-05
        %v507 = vrsqrt.pop %v506
        %v508 = vmul.f32 %v277, %v507
        %v509 = vmul.f32 %v488, %v508
        %v511 = vrot.slane %v509, 7
        %v513 = vsub.f32 %v277, %v511
        %v514 = vlaneseq
        %v515 = vshrl.u32 %v514, 7
        %v516 = vsub.s32 4, %v515
        %v517 = vrot.slane %v508, %v516
        %v518 = vmul.f32 %v462, %v517
        %v519 = vmul.f32 %v467, %v517
        %v520 = vmul.f32 %v472, %v517
        %v521 = vlaneseq
        %v522 = vshrl.u32 %v521, 7
        %v523 = vsub.s32 5, %v522
        %v524 = vrot.slane %v513, %v523
        %v525 = vadd.f32 %v518, %v524
        %v526 = vadd.f32 %v519, %v524
        %v527 = vadd.f32 %v520, %v524
        %v528 = vmax.f32 %v525, 0.0
        %v529 = vmax.f32 %v526, 0.0
        %v530 = vmax.f32 %v527, 0.0
        %v531 = vlaneseq
        %v532 = vshrl.u32 %v531, 7
        %v533 = vsub.s32 6, %v532
        %v534 = vrot.slane %v281, %v533
        %vm539 = vcmask 1041408
        %v540 = vrot.slane %v277, 6
        %v541 = vrot.slane %v278, 6
        %v542 = vsel %vm539, %v540, %v541
        %v543 = vrot.slane %v279, 6
        %v544 = vsel %vm539, %v541, %v543
        %v545 = vrot.slane %v280, 6
        %v546 = vsel %vm539, %v543, %v545
        %v547 = vrot.slane %v281, 6
        %v548 = vsel %vm539, %v545, %v547
        %v554 = vsel %vm475, %v528, 0
        %v557 = vsel %vm475, %v529, 0
        %v560 = vsel %vm475, %v530, 0
        %562 = vmatprep.subr.mxu0 0.0
        %563 = vmatpush1.msra.mxu0 %v542
        %564 = vmatprep.subr.mxu0 0.0
        %565 = vmatpush1.msra.mxu0 %v544
        %566 = vmatprep.subr.mxu0 0.0
        %567 = vmatpush1.msra.mxu0 %v546
        %568 = vmatprep.subr.mxu0 0.0
        %569 = vmatpush1.msra.mxu0 %v548
        %570 = vmatprep.subr.mxu0 0.0
        %571 = vmatpush1.msra.mxu0 0.0
        %572 = vmatprep.subr.mxu0 0.0
        %573 = vmatpush1.msra.mxu0 0.0
        %574 = vmatprep.subr.mxu0 0.0
        %575 = vmatpush1.msra.mxu0 0.0
        %576 = vmatprep.subr.mxu0 0.0
        %577 = vmatpush1.msra.mxu0 0.0
        %578 = vmatprep.subr.mxu0 0.0
        %579 = vmatpush1.msra.mxu0 0.0
        %580 = vmatprep.subr.mxu0 0.0
        %581 = vmatpush1.msra.mxu0 0.0
        %582 = vmatprep.subr.mxu0 0.0
        %583 = vmatpush1.msra.mxu0 0.0
        %584 = vmatprep.subr.mxu0 0.0
        %585 = vmatpush1.msra.mxu0 0.0
        %586 = vmatprep.subr.mxu0 0.0
        %587 = vmatpush1.msra.mxu0 0.0
        %588 = vmatprep.subr.mxu0 0.0
        %589 = vmatpush1.msra.mxu0 0.0
        %590 = vmatprep.subr.mxu0 0.0
        %591 = vmatpush1.msra.mxu0 0.0
        %592 = vmatprep.subr.mxu0 0.0
        %593 = vmatpush1.msra.mxu0 0.0
        %594 = vmatprep.subr.mxu0 0.0
        %595 = vmatpush1.msra.mxu0 0.0
        %596 = vmatprep.subr.mxu0 0.0
        %597 = vmatpush1.msra.mxu0 0.0
        %598 = vmatprep.subr.mxu0 0.0
        %599 = vmatpush1.msra.mxu0 0.0
        %600 = vmatprep.subr.mxu0 0.0
        %601 = vmatpush1.msra.mxu0 0.0
        %602 = vmatprep.subr.mxu0 0.0
        %603 = vmatpush1.msra.mxu0 0.0
        %604 = vmatprep.subr.mxu0 0.0
        %605 = vmatpush1.msra.mxu0 0.0
        %606 = vmatprep.subr.mxu0 0.0
        %607 = vmatpush1.msra.mxu0 0.0
        %608 = vmatprep.subr.mxu0 0.0
        %609 = vmatpush1.msra.mxu0 0.0
        %610 = vmatprep.subr.mxu0 0.0
        %611 = vmatpush1.msra.mxu0 0.0
        %612 = vmatprep.subr.mxu0 0.0
        %613 = vmatpush1.msra.mxu0 0.0
        %614 = vmatprep.subr.mxu0 0.0
        %615 = vmatpush1.msra.mxu0 0.0
        %616 = vmatprep.subr.mxu0 0.0
        %617 = vmatpush1.msra.mxu0 0.0
        %618 = vmatprep.subr.mxu0 0.0
        %619 = vmatpush1.msra.mxu0 0.0
        %620 = vmatprep.subr.mxu0 0.0
        %621 = vmatpush1.msra.mxu0 0.0
        %622 = vmatprep.subr.mxu0 0.0
        %623 = vmatpush1.msra.mxu0 0.0
        %624 = vmatprep.subr.mxu0 0.0
        %625 = vmatpush1.msra.mxu0 0.0
        %626 = vmatprep.mubr.f32.mxu0 0.0
        %627 = vmatmul.mubr.f32.gmra.mrb[0].mxu0 %v554
        %v628 = vpop.f32.mrb[0].mxu0
        %v629 = vadd.f32 %v534, %v628
        %v630 = vpop.f32.mrb[0].mxu0
        %631 = vmatprep.mubr.f32.mxu0 0.0
        %632 = vmatmul.mubr.f32.gmra.mrb[0].mxu0 %v557
        %v633 = vpop.f32.mrb[0].mxu0
        %v634 = vadd.f32 %v534, %v633
        %v635 = vpop.f32.mrb[0].mxu0
        %636 = vmatprep.mubr.f32.mxu0 0.0
        %637 = vmatmul.mubr.f32.gmra.mrb[0].mxu0 %v560
        %v638 = vpop.f32.mrb[0].mxu0
        %v639 = vadd.f32 %v534, %v638
        %v640 = vpop.f32.mrb[0].mxu0
        %641 = vdwg.mxu0
        %v642 = vmul.f32 %v629, 0.01
        %v643 = vmul.f32 %v634, 0.01
        %v644 = vmul.f32 %v639, 0.01
        %v645 = vmax.f32 %v629, %v642
        %v646 = vmax.f32 %v634, %v643
        %v647 = vmax.f32 %v639, %v644
        %648 = vmatprep.subr.mxu0 0.0
        %649 = vmatpush1.msra.mxu0 %v645
        %650 = vmatprep.subr.mxu0 0.0
        %651 = vmatpush1.msra.mxu0 %v646
        %652 = vmatprep.subr.mxu0 0.0
        %653 = vmatpush1.msra.mxu0 %v647
        %654 = vmatprep.subr.mxu0 0.0
        %655 = vmatpush1.msra.mxu0 0.0
        %656 = vmatprep.subr.mxu0 0.0
        %657 = vmatpush1.msra.mxu0 0.0
        %658 = vmatprep.subr.mxu0 0.0
        %659 = vmatpush1.msra.mxu0 0.0
        %660 = vmatprep.subr.mxu0 0.0
        %661 = vmatpush1.msra.mxu0 0.0
        %662 = vmatprep.subr.mxu0 0.0
        %663 = vmatpush1.msra.mxu0 0.0
        %664 = vmatprep.subr.mxu0 0.0
        %665 = vmatpush1.msra.mxu0 0.0
        %666 = vmatprep.subr.mxu0 0.0
        %667 = vmatpush1.msra.mxu0 0.0
        %668 = vmatprep.subr.mxu0 0.0
        %669 = vmatpush1.msra.mxu0 0.0
        %670 = vmatprep.subr.mxu0 0.0
        %671 = vmatpush1.msra.mxu0 0.0
        %672 = vmatprep.subr.mxu0 0.0
        %673 = vmatpush1.msra.mxu0 0.0
        %674 = vmatprep.subr.mxu0 0.0
        %675 = vmatpush1.msra.mxu0 0.0
        %676 = vmatprep.subr.mxu0 0.0
        %677 = vmatpush1.msra.mxu0 0.0
        %678 = vmatprep.subr.mxu0 0.0
        %679 = vmatpush1.msra.mxu0 0.0
        %680 = vmatprep.subr.mxu0 0.0
        %681 = vmatpush1.msra.mxu0 0.0
        %682 = vmatprep.subr.mxu0 0.0
        %683 = vmatpush1.msra.mxu0 0.0
        %684 = vmatprep.subr.mxu0 0.0
        %685 = vmatpush1.msra.mxu0 0.0
        %686 = vmatprep.subr.mxu0 0.0
        %687 = vmatpush1.msra.mxu0 0.0
        %688 = vmatprep.subr.mxu0 0.0
        %689 = vmatpush1.msra.mxu0 0.0
        %690 = vmatprep.subr.mxu0 0.0
        %691 = vmatpush1.msra.mxu0 0.0
        %692 = vmatprep.subr.mxu0 0.0
        %693 = vmatpush1.msra.mxu0 0.0
        %694 = vmatprep.subr.mxu0 0.0
        %695 = vmatpush1.msra.mxu0 0.0
        %696 = vmatprep.subr.mxu0 0.0
        %697 = vmatpush1.msra.mxu0 0.0
        %698 = vmatprep.subr.mxu0 0.0
        %699 = vmatpush1.msra.mxu0 0.0
        %700 = vmatprep.subr.mxu0 0.0
        %701 = vmatpush1.msra.mxu0 0.0
        %702 = vmatprep.subr.mxu0 0.0
        %703 = vmatpush1.msra.mxu0 0.0
        %704 = vmatprep.subr.mxu0 0.0
        %705 = vmatpush1.msra.mxu0 0.0
        %706 = vmatprep.subr.mxu0 0.0
        %707 = vmatpush1.msra.mxu0 0.0
        %708 = vmatprep.subr.mxu0 0.0
        %709 = vmatpush1.msra.mxu0 0.0
        %710 = vmatprep.subr.mxu0 0.0
        %711 = vmatpush1.msra.mxu0 0.0
        %712 = vmatprep.mubr.f32.mxu0 0.0
        %713 = vmatmul.mubr.f32.gmra.mrb[0].mxu0 %v293
        %v714 = vpop.f32.mrb[0].mxu0
        %v715 = vadd.f32 0.0, %v714
        %v716 = vpop.f32.mrb[0].mxu0
        %717 = vmatprep.mubr.f32.mxu0 0.0
        %718 = vmatmul.mubr.f32.gmra.mrb[0].mxu0 %v296
        %v719 = vpop.f32.mrb[0].mxu0
        %v720 = vadd.f32 0.0, %v719
        %v721 = vpop.f32.mrb[0].mxu0
        %722 = vmatprep.mubr.f32.mxu0 0.0
        %723 = vmatmul.mubr.f32.gmra.mrb[0].mxu0 %v299
        %v724 = vpop.f32.mrb[0].mxu0
        %v725 = vadd.f32 0.0, %v724
        %v726 = vpop.f32.mrb[0].mxu0
        %727 = vdwg.mxu0
        %vm732 = vcmask 1040384
        %v733 = vrot.slane %v281, 7
        %v734 = vrot.slane %v282, 7
        %v735 = vsel %vm732, %v733, %v734
        %v736 = vrot.slane %v283, 7
        %v737 = vsel %vm732, %v734, %v736
        %v738 = vrot.slane %v284, 7
        %v739 = vsel %vm732, %v736, %v738
        %v740 = vrot.slane %v285, 7
        %v741 = vsel %vm732, %v738, %v740
        %v747 = vsel %vm475, %v715, 0
        %v750 = vsel %vm475, %v720, 0
        %v753 = vsel %vm475, %v725, 0
        %755 = vmatprep.subr.mxu0 0.0
        %756 = vmatpush1.msra.mxu0 %v735
        %757 = vmatprep.subr.mxu0 0.0
        %758 = vmatpush1.msra.mxu0 %v737
        %759 = vmatprep.subr.mxu0 0.0
        %760 = vmatpush1.msra.mxu0 %v739
        %761 = vmatprep.subr.mxu0 0.0
        %762 = vmatpush1.msra.mxu0 %v741
        %763 = vmatprep.subr.mxu0 0.0
        %764 = vmatpush1.msra.mxu0 0.0
        %765 = vmatprep.subr.mxu0 0.0
        %766 = vmatpush1.msra.mxu0 0.0
        %767 = vmatprep.subr.mxu0 0.0
        %768 = vmatpush1.msra.mxu0 0.0
        %769 = vmatprep.subr.mxu0 0.0
        %770 = vmatpush1.msra.mxu0 0.0
        %771 = vmatprep.subr.mxu0 0.0
        %772 = vmatpush1.msra.mxu0 0.0
        %773 = vmatprep.subr.mxu0 0.0
        %774 = vmatpush1.msra.mxu0 0.0
        %775 = vmatprep.subr.mxu0 0.0
        %776 = vmatpush1.msra.mxu0 0.0
        %777 = vmatprep.subr.mxu0 0.0
        %778 = vmatpush1.msra.mxu0 0.0
        %779 = vmatprep.subr.mxu0 0.0
        %780 = vmatpush1.msra.mxu0 0.0
        %781 = vmatprep.subr.mxu0 0.0
        %782 = vmatpush1.msra.mxu0 0.0
        %783 = vmatprep.subr.mxu0 0.0
        %784 = vmatpush1.msra.mxu0 0.0
        %785 = vmatprep.subr.mxu0 0.0
        %786 = vmatpush1.msra.mxu0 0.0
        %787 = vmatprep.subr.mxu0 0.0
        %788 = vmatpush1.msra.mxu0 0.0
        %789 = vmatprep.subr.mxu0 0.0
        %790 = vmatpush1.msra.mxu0 0.0
        %791 = vmatprep.subr.mxu0 0.0
        %792 = vmatpush1.msra.mxu0 0.0
        %793 = vmatprep.subr.mxu0 0.0
        %794 = vmatpush1.msra.mxu0 0.0
        %795 = vmatprep.subr.mxu0 0.0
        %796 = vmatpush1.msra.mxu0 0.0
        %797 = vmatprep.subr.mxu0 0.0
        %798 = vmatpush1.msra.mxu0 0.0
        %799 = vmatprep.subr.mxu0 0.0
        %800 = vmatpush1.msra.mxu0 0.0
        %801 = vmatprep.subr.mxu0 0.0
        %802 = vmatpush1.msra.mxu0 0.0
        %803 = vmatprep.subr.mxu0 0.0
        %804 = vmatpush1.msra.mxu0 0.0
        %805 = vmatprep.subr.mxu0 0.0
        %806 = vmatpush1.msra.mxu0 0.0
        %807 = vmatprep.subr.mxu0 0.0
        %808 = vmatpush1.msra.mxu0 0.0
        %809 = vmatprep.subr.mxu0 0.0
        %810 = vmatpush1.msra.mxu0 0.0
        %811 = vmatprep.subr.mxu0 0.0
        %812 = vmatpush1.msra.mxu0 0.0
        %813 = vmatprep.subr.mxu0 0.0
        %814 = vmatpush1.msra.mxu0 0.0
        %815 = vmatprep.subr.mxu0 0.0
        %816 = vmatpush1.msra.mxu0 0.0
        %817 = vmatprep.subr.mxu0 0.0
        %818 = vmatpush1.msra.mxu0 0.0
        %819 = vmatprep.mubr.f32.mxu0 0.0
        %820 = vmatmul.mubr.f32.gmra.mrb[0].mxu0 %v747
        %v821 = vpop.f32.mrb[0].mxu0
        %v822 = vadd.f32 0.0, %v821
        %v823 = vpop.f32.mrb[0].mxu0
        %824 = vmatprep.mubr.f32.mxu0 0.0
        %825 = vmatmul.mubr.f32.gmra.mrb[0].mxu0 %v750
        %v826 = vpop.f32.mrb[0].mxu0
        %v827 = vadd.f32 0.0, %v826
        %v828 = vpop.f32.mrb[0].mxu0
        %829 = vmatprep.mubr.f32.mxu0 0.0
        %830 = vmatmul.mubr.f32.gmra.mrb[0].mxu0 %v753
        %v831 = vpop.f32.mrb[0].mxu0
        %v832 = vadd.f32 0.0, %v831
        %v833 = vpop.f32.mrb[0].mxu0
        %834 = vdwg.mxu0
        %v835 = vsel %vm475, %v822, 0.0
        %v836 = vsel %vm475, %v827, 0.0
        %v837 = vadd.f32 %v835, %v836
        %v838 = vsel %vm475, %v832, 0.0
        %v839 = vadd.f32 %v837, %v838
        %v840 = vrot.slane %v839, 4
        %v841 = vadd.f32 %v839, %v840
        %v842 = vrot.slane %v841, 2
        %v843 = vadd.f32 %v841, %v842
        %v844 = vrot.slane %v843, 1
        %v845 = vadd.f32 %v843, %v844
        %v846 = vmul.f32 %v845, %v487
        %v847 = vmul.f32 %v822, %v822
        %v848 = vmul.f32 %v827, %v827
        %v849 = vmul.f32 %v832, %v832
        %v850 = vsel %vm475, %v847, 0.0
        %v851 = vsel %vm475, %v848, 0.0
        %v852 = vadd.f32 %v850, %v851
        %v853 = vsel %vm475, %v849, 0.0
        %v854 = vadd.f32 %v852, %v853
        %v855 = vrot.slane %v854, 4
        %v856 = vadd.f32 %v854, %v855
        %v857 = vrot.slane %v856, 2
        %v858 = vadd.f32 %v856, %v857
        %v859 = vrot.slane %v858, 1
        %v860 = vadd.f32 %v858, %v859
        %v861 = vmul.f32 %v860, %v487
        %v862 = vmul.f32 %v846, %v846
        %v863 = vsub.f32 %v861, %v862
        %v864 = vadd.f32 %v863, 1e-05
        %v865 = vrsqrt.pop %v864
        %v866 = vmul.f32 %v285, %v865
        %v867 = vmul.f32 %v846, %v866
        %v869 = vrot.slane %v867, 7
        %v871 = vsub.f32 %v286, %v869
        %v872 = vlaneseq
        %v873 = vshrl.u32 %v872, 7
        %v874 = vsub.s32 7, %v873
        %v875 = vrot.slane %v866, %v874
        %v876 = vmul.f32 %v822, %v875
        %v877 = vmul.f32 %v827, %v875
        %v878 = vmul.f32 %v832, %v875
        %v879 = vlaneseq
        %v880 = vshrl.u32 %v879, 7
        %v881 = vsub.s32 0, %v880
        %v882 = vrot.slane %v871, %v881
        %v883 = vadd.f32 %v876, %v882
        %v884 = vadd.f32 %v877, %v882
        %v885 = vadd.f32 %v878, %v882
        %v886 = vmax.f32 %v883, 0.0
        %v887 = vmax.f32 %v884, 0.0
        %v888 = vmax.f32 %v885, 0.0
        %v889 = vlaneseq
        %v890 = vshrl.u32 %v889, 7
        %v891 = vsub.s32 1, %v890
        %v892 = vrot.slane %v290, %v891
        %vm898 = vcmask 1046528
        %v899 = vrot.slane %v286, 1
        %v900 = vrot.slane %v287, 1
        %v901 = vsel %vm898, %v899, %v900
        %v902 = vrot.slane %v288, 1
        %v903 = vsel %vm898, %v900, %v902
        %v904 = vrot.slane %v289, 1
        %v905 = vsel %vm898, %v902, %v904
        %v906 = vrot.slane %v290, 1
        %v907 = vsel %vm898, %v904, %v906
        %v913 = vsel %vm475, %v886, 0
        %v916 = vsel %vm475, %v887, 0
        %v919 = vsel %vm475, %v888, 0
        %921 = vmatprep.subr.mxu0 0.0
        %922 = vmatpush1.msra.mxu0 %v901
        %923 = vmatprep.subr.mxu0 0.0
        %924 = vmatpush1.msra.mxu0 %v903
        %925 = vmatprep.subr.mxu0 0.0
        %926 = vmatpush1.msra.mxu0 %v905
        %927 = vmatprep.subr.mxu0 0.0
        %928 = vmatpush1.msra.mxu0 %v907
        %929 = vmatprep.subr.mxu0 0.0
        %930 = vmatpush1.msra.mxu0 0.0
        %931 = vmatprep.subr.mxu0 0.0
        %932 = vmatpush1.msra.mxu0 0.0
        %933 = vmatprep.subr.mxu0 0.0
        %934 = vmatpush1.msra.mxu0 0.0
        %935 = vmatprep.subr.mxu0 0.0
        %936 = vmatpush1.msra.mxu0 0.0
        %937 = vmatprep.subr.mxu0 0.0
        %938 = vmatpush1.msra.mxu0 0.0
        %939 = vmatprep.subr.mxu0 0.0
        %940 = vmatpush1.msra.mxu0 0.0
        %941 = vmatprep.subr.mxu0 0.0
        %942 = vmatpush1.msra.mxu0 0.0
        %943 = vmatprep.subr.mxu0 0.0
        %944 = vmatpush1.msra.mxu0 0.0
        %945 = vmatprep.subr.mxu0 0.0
        %946 = vmatpush1.msra.mxu0 0.0
        %947 = vmatprep.subr.mxu0 0.0
        %948 = vmatpush1.msra.mxu0 0.0
        %949 = vmatprep.subr.mxu0 0.0
        %950 = vmatpush1.msra.mxu0 0.0
        %951 = vmatprep.subr.mxu0 0.0
        %952 = vmatpush1.msra.mxu0 0.0
        %953 = vmatprep.subr.mxu0 0.0
        %954 = vmatpush1.msra.mxu0 0.0
        %955 = vmatprep.subr.mxu0 0.0
        %956 = vmatpush1.msra.mxu0 0.0
        %957 = vmatprep.subr.mxu0 0.0
        %958 = vmatpush1.msra.mxu0 0.0
        %959 = vmatprep.subr.mxu0 0.0
        %960 = vmatpush1.msra.mxu0 0.0
        %961 = vmatprep.subr.mxu0 0.0
        %962 = vmatpush1.msra.mxu0 0.0
        %963 = vmatprep.subr.mxu0 0.0
        %964 = vmatpush1.msra.mxu0 0.0
        %965 = vmatprep.subr.mxu0 0.0
        %966 = vmatpush1.msra.mxu0 0.0
        %967 = vmatprep.subr.mxu0 0.0
        %968 = vmatpush1.msra.mxu0 0.0
        %969 = vmatprep.subr.mxu0 0.0
        %970 = vmatpush1.msra.mxu0 0.0
        %971 = vmatprep.subr.mxu0 0.0
        %972 = vmatpush1.msra.mxu0 0.0
        %973 = vmatprep.subr.mxu0 0.0
        %974 = vmatpush1.msra.mxu0 0.0
        %975 = vmatprep.subr.mxu0 0.0
        %976 = vmatpush1.msra.mxu0 0.0
        %977 = vmatprep.subr.mxu0 0.0
        %978 = vmatpush1.msra.mxu0 0.0
        %979 = vmatprep.subr.mxu0 0.0
        %980 = vmatpush1.msra.mxu0 0.0
        %981 = vmatprep.subr.mxu0 0.0
        %982 = vmatpush1.msra.mxu0 0.0
        %983 = vmatprep.subr.mxu0 0.0
        %984 = vmatpush1.msra.mxu0 0.0
        %985 = vmatprep.mubr.f32.mxu0 0.0
        %986 = vmatmul.mubr.f32.gmra.mrb[0].mxu0 %v913
        %v987 = vpop.f32.mrb[0].mxu0
        %v988 = vadd.f32 %v892, %v987
        %v989 = vpop.f32.mrb[0].mxu0
        %990 = vmatprep.mubr.f32.mxu0 0.0
        %991 = vmatmul.mubr.f32.gmra.mrb[0].mxu0 %v916
        %v992 = vpop.f32.mrb[0].mxu0
        %v993 = vadd.f32 %v892, %v992
        %v994 = vpop.f32.mrb[0].mxu0
        %995 = vmatprep.mubr.f32.mxu0 0.0
        %996 = vmatmul.mubr.f32.gmra.mrb[0].mxu0 %v919
        %v997 = vpop.f32.mrb[0].mxu0
        %v998 = vadd.f32 %v892, %v997
        %v999 = vpop.f32.mrb[0].mxu0
        %1000 = vdwg.mxu0
        %v1001 = vmul.f32 %v988, 0.01
        %v1002 = vmul.f32 %v993, 0.01
        %v1003 = vmul.f32 %v998, 0.01
        %v1004 = vmax.f32 %v988, %v1001
        %v1005 = vmax.f32 %v993, %v1002
        %v1006 = vmax.f32 %v998, %v1003
        %1007 = vst.msk [vmem:[%s256] sm:$0xff] %vm475, %v1004
        %1008 = vst.msk [vmem:[%s256 + $0x8] sm:$0xff] %vm475, %v1005
        %1009 = vst.msk [vmem:[%s256 + $0x10] sm:$0xff] %vm475, %v1006
        %v1010 = vld [vmem:[%s270] sm:$0x3]
        %v1012 = vsel %vm291, %v1010, 0
        %1014 = vmatprep.subr.mxu0 0.0
        %1015 = vmatpush1.msra.mxu0 %v1004
        %1016 = vmatprep.subr.mxu0 0.0
        %1017 = vmatpush1.msra.mxu0 %v1005
        %1018 = vmatprep.subr.mxu0 0.0
        %1019 = vmatpush1.msra.mxu0 %v1006
        %1020 = vmatprep.subr.mxu0 0.0
        %1021 = vmatpush1.msra.mxu0 0.0
        %1022 = vmatprep.subr.mxu0 0.0
        %1023 = vmatpush1.msra.mxu0 0.0
        %1024 = vmatprep.subr.mxu0 0.0
        %1025 = vmatpush1.msra.mxu0 0.0
        %1026 = vmatprep.subr.mxu0 0.0
        %1027 = vmatpush1.msra.mxu0 0.0
        %1028 = vmatprep.subr.mxu0 0.0
        %1029 = vmatpush1.msra.mxu0 0.0
        %1030 = vmatprep.subr.mxu0 0.0
        %1031 = vmatpush1.msra.mxu0 0.0
        %1032 = vmatprep.subr.mxu0 0.0
        %1033 = vmatpush1.msra.mxu0 0.0
        %1034 = vmatprep.subr.mxu0 0.0
        %1035 = vmatpush1.msra.mxu0 0.0
        %1036 = vmatprep.subr.mxu0 0.0
        %1037 = vmatpush1.msra.mxu0 0.0
        %1038 = vmatprep.subr.mxu0 0.0
        %1039 = vmatpush1.msra.mxu0 0.0
        %1040 = vmatprep.subr.mxu0 0.0
        %1041 = vmatpush1.msra.mxu0 0.0
        %1042 = vmatprep.subr.mxu0 0.0
        %1043 = vmatpush1.msra.mxu0 0.0
        %1044 = vmatprep.subr.mxu0 0.0
        %1045 = vmatpush1.msra.mxu0 0.0
        %1046 = vmatprep.subr.mxu0 0.0
        %1047 = vmatpush1.msra.mxu0 0.0
        %1048 = vmatprep.subr.mxu0 0.0
        %1049 = vmatpush1.msra.mxu0 0.0
        %1050 = vmatprep.subr.mxu0 0.0
        %1051 = vmatpush1.msra.mxu0 0.0
        %1052 = vmatprep.subr.mxu0 0.0
        %1053 = vmatpush1.msra.mxu0 0.0
        %1054 = vmatprep.subr.mxu0 0.0
        %1055 = vmatpush1.msra.mxu0 0.0
        %1056 = vmatprep.subr.mxu0 0.0
        %1057 = vmatpush1.msra.mxu0 0.0
        %1058 = vmatprep.subr.mxu0 0.0
        %1059 = vmatpush1.msra.mxu0 0.0
        %1060 = vmatprep.subr.mxu0 0.0
        %1061 = vmatpush1.msra.mxu0 0.0
        %1062 = vmatprep.subr.mxu0 0.0
        %1063 = vmatpush1.msra.mxu0 0.0
        %1064 = vmatprep.subr.mxu0 0.0
        %1065 = vmatpush1.msra.mxu0 0.0
        %1066 = vmatprep.subr.mxu0 0.0
        %1067 = vmatpush1.msra.mxu0 0.0
        %1068 = vmatprep.subr.mxu0 0.0
        %1069 = vmatpush1.msra.mxu0 0.0
        %1070 = vmatprep.subr.mxu0 0.0
        %1071 = vmatpush1.msra.mxu0 0.0
        %1072 = vmatprep.subr.mxu0 0.0
        %1073 = vmatpush1.msra.mxu0 0.0
        %1074 = vmatprep.subr.mxu0 0.0
        %1075 = vmatpush1.msra.mxu0 0.0
        %1076 = vmatprep.subr.mxu0 0.0
        %1077 = vmatpush1.msra.mxu0 0.0
        %1078 = vmatprep.mubr.f32.mxu0 0.0
        %1079 = vmatmul.mubr.f32.gmra.mrb[0].mxu0 %v1012
        %v1080 = vpop.f32.mrb[0].mxu0
        %v1081 = vadd.f32 0.0, %v1080
        %v1082 = vpop.f32.mrb[0].mxu0
        %1083 = vdwg.mxu0
        %vm1084 = vcmask 254976
        %1085 = vst.msk [vmem:[%s249] sm:$0x3] %vm1084, %v1081
        %s1086 = sand.u32 %s130, 1
        %s1087 = scalar_lea.sflag [#allocation3], %s1086
        %s1088 = sand.u32 %s130, 1
        %s1089 = smul.addr %s1088, 2
        %s1090 = scalar_lea.vmem [#allocation2], %s1089
        %s1091 = sand.u32 %s156, 1
        %s1092 = scalar_lea.sflag [#allocation5], %s1091
        %s1093 = sand.u32 %s156, 1
        %s1094 = smul.addr %s1093, 24
        %s1095 = scalar_lea.vmem [#allocation4], %s1094
        // Predicated region
        $region37: #{_forward_impl.1} parent=35 // pred_check
          %p1096 = pneg %p140
        $region38: #{_forward_impl.1} parent=35 // pred_check_branch
          %1098 = sbr.rel (%p1096) target = $region40
        $region39: #{_forward_impl.1} parent=35 // pred_region
          %s1100 = ssub.s32 32, 32
          %1101 = vsyncadd %s1087, %s1100
          %s1102 = smul.addr %s23, 32
          %s1103 = scalar_lea.hbm %s4, %s1102
          %s1105 = sshll.u32 %s1090, 4
          %s1106 = int_to_ptr.vmem [resolvable:$true] %s1105
          %1108 = dma.vmem_to_hbm [thread:$0]  %s1106, 32, %s1103, %s1087
        $region40: #{_forward_impl.1} parent=35 // pred_fallthru
          _
        // Predicated region
        $region41: #{_forward_impl.1} parent=35 // pred_check
          %p1109 = pneg %p166
        $region42: #{_forward_impl.1} parent=35 // pred_check_branch
          %1111 = sbr.rel (%p1109) target = $region44
        $region43: #{_forward_impl.1} parent=35 // pred_region
          %s1113 = ssub.s32 384, 384
          %1114 = vsyncadd %s1092, %s1113
          %s1115 = smul.addr %s23, 3
          %s1116 = smul.addr %s1115, 128
          %s1117 = scalar_lea.hbm %s5, %s1116
          %s1118 = sshll.u32 %s1095, 4
          %s1119 = int_to_ptr.vmem [resolvable:$true] %s1118
          %1124 = dma.vmem_to_hbm [thread:$0]  %s1119, 384, %s1117, %s1092, 128, 128, 8
        $region44: #{_forward_impl.1} parent=35 // pred_fallthru
          _
      $region36: #{_forward_impl.1} parent=5 // pred_fallthru
        _
      %p1125 = scmp.le.s32.totalorder 2, %s18
      // Predicated region
      $region45: #{_forward_impl.1} parent=5 // pred_check
        %p1126 = pneg %p1125
      $region46: #{_forward_impl.1} parent=5 // pred_check_branch
        %1128 = sbr.rel (%p1126) target = $region48
      $region47: #{_forward_impl.1} parent=5 // pred_region
        %s1129 = ssub.s32 %s18, 2
        // Predicated region
        $region49: #{_forward_impl.1} parent=47 // pred_check
          %p1130 = pneg %p146
        $region50: #{_forward_impl.1} parent=47 // pred_check_branch
          %1132 = sbr.rel (%p1130) target = $region52
        $region51: #{_forward_impl.1} parent=47 // pred_region
          %s1133 = sand.u32 %s131, 1
          %s1134 = scalar_lea.sflag [#allocation3], %s1133
          %s1135 = sand.u32 %s131, 1
          %s1136 = smul.addr %s1135, 2
          %s1137 = scalar_lea.vmem [#allocation2], %s1136
          %1138 = dma.done %s1134, 32
        $region52: #{_forward_impl.1} parent=47 // pred_fallthru
          _
        // Predicated region
        $region53: #{_forward_impl.1} parent=47 // pred_check
          %p1139 = pneg %p172
        $region54: #{_forward_impl.1} parent=47 // pred_check_branch
          %1141 = sbr.rel (%p1139) target = $region56
        $region55: #{_forward_impl.1} parent=47 // pred_region
          %s1142 = sand.u32 %s157, 1
          %s1143 = scalar_lea.sflag [#allocation5], %s1142
          %s1144 = sand.u32 %s157, 1
          %s1145 = smul.addr %s1144, 24
          %s1146 = scalar_lea.vmem [#allocation4], %s1145
          %1147 = dma.done %s1143, 384
        $region56: #{_forward_impl.1} parent=47 // pred_fallthru
          _
      $region48: #{_forward_impl.1} parent=5 // pred_fallthru
        _
    $region6: #{_forward_impl.1} parent=1 // loop_footer
      %s22 = sadd.s32 1, %s18
    $region7: #{_forward_impl.1} parent=1 // loop_footer_branch
      %17 = sbr.rel target = $region3
    $region8: #{_forward_impl.1} parent=1 // loop_exit
      _
    %1148 = vsyncpa [#allocation3], 1
    %s1149 = scalar_lea.sflag [#allocation3], 1
    %1150 = vsyncpa %s1149, 1
    %1151 = vsyncpa [#allocation5], 1
    %s1152 = scalar_lea.sflag [#allocation5], 1
    %1153 = vsyncpa %s1152, 1

</llo_original>
